<compile_context>
chip_gen: v7x
topology: tpu7x:2x2x1
jax: 0.10.0
libtpu: 0.0.40
codegen_flags: <defaults>
</compile_context>

<pallas_src>
import functools
import math

import jax
import jax.numpy as jnp
from jax import lax
from jax.experimental import pallas as pl
from jax.experimental.pallas import tpu as pltpu


# ----------------------------------------------------------------------------
# Prologue kernel: A_hat = (A + I) / rowsum(A + I), computed exactly once on
# the already node-padded adjacency (pad rows get identity -> rowsum = 1).
# ----------------------------------------------------------------------------
def _normalize_adj_kernel(a_ref, o_ref):
    n = a_ref.shape[0]
    a = a_ref[...].astype(jnp.float32)
    row = lax.broadcasted_iota(jnp.int32, (n, n), 0)
    col = lax.broadcasted_iota(jnp.int32, (n, n), 1)
    a = a + (row == col).astype(jnp.float32)
    o_ref[...] = a / jnp.sum(a, axis=1, keepdims=True)


# ----------------------------------------------------------------------------
# Main kernel: mix-hop propagation + MXU output projection for one row block.
#
#   x_ref    : (G*n_pad, P*c_in)  packed input block       (VMEM, pipelined)
#   a_ref    : (n_pad, n_pad)     normalized adjacency      (VMEM, resident)
#   b_ref    : (gdep+1, P*c_in, P*c_out) block-diag weights (VMEM, resident)
#   bias_ref : (1, P*c_out)       packed bias               (VMEM, resident)
#   o_ref    : (G*n_pad, P*c_out) packed output block (f32 accumulator)
#   h_ref    : (G*n_pad, P*c_in)  hop-state VMEM scratch
# ----------------------------------------------------------------------------
def _mixprop_kernel(x_ref, a_ref, b_ref, bias_ref, o_ref, h_ref, *,
                    gdep, alpha, n_pad, groups_per_block, precision):
    f32 = jnp.float32
    a_hat = a_ref[...]                                   # (n_pad, n_pad)

    # Hop 0: seed the output block with the bias and add X @ B_0 (MXU).
    o_ref[...] = (jnp.broadcast_to(bias_ref[...], o_ref.shape)
                  + jnp.dot(x_ref[...], b_ref[0],
                            preferred_element_type=f32, precision=precision))

    # Hops 1..gdep: per-group node mixing on the MXU (A shared, no broadcast),
    # hop state updated in place in VMEM scratch, projection accumulated
    # straight into the output block with one matmul per hop.
    for k in range(1, gdep + 1):
        src_ref = x_ref if k == 1 else h_ref
        for g in range(groups_per_block):
            rows = pl.ds(g * n_pad, n_pad)               # static, 8-aligned
            prop = jnp.dot(a_hat, src_ref[rows, :],
                           preferred_element_type=f32, precision=precision)
            h_ref[rows, :] = alpha * x_ref[rows, :] + (1.0 - alpha) * prop
        o_ref[...] += jnp.dot(h_ref[...], b_ref[k],
                              preferred_element_type=f32, precision=precision)


# ----------------------------------------------------------------------------
# Generation-dependent tuning knobs.
# ----------------------------------------------------------------------------
def _hw_config():
    kind = ""
    try:
        kind = jax.devices()[0].device_kind.lower()
    except Exception:
        pass
    if "v5 lite" in kind or "v5e" in kind or "v5litepod" in kind:
        return dict(name="v5e", node_multiple=128,
                    vmem_budget=64 << 20, vmem_limit=96 << 20, min_steps=2)
    if "v6" in kind:
        return dict(name="v6e", node_multiple=256,
                    vmem_budget=64 << 20, vmem_limit=96 << 20, min_steps=2)
    if "v7" in kind or "7x" in kind:
        return dict(name="v7x", node_multiple=256,
                    vmem_budget=24 << 20, vmem_limit=40 << 20, min_steps=4)
    return dict(name="unknown", node_multiple=128,
                vmem_budget=32 << 20, vmem_limit=64 << 20, min_steps=2)


def _round_up(x, m):
    return ((x + m - 1) // m) * m


def _cdiv(a, b):
    return (a + b - 1) // b


def _choose_time_pack(c_in, c_out, gdep, max_b_bytes=8 << 20):
    """Time steps packed per group so P*c_in (and ideally P*c_out) are 128-
    multiples -> lane-dense blocks and full-width MXU operands."""
    p0 = 128 // math.gcd(c_in, 128)
    p1 = 128 // math.gcd(c_out, 128)
    for p in (p0 * p1 // math.gcd(p0, p1), p0, 1):
        if 4 * (gdep + 1) * (p * c_in) * (p * c_out) <= max_b_bytes:
            return p
    return 1


def _vmem_bytes_estimate(gt, n_pad, pcin, pcout, gdep):
    rows = gt * n_pad
    blocks = 4 * rows * 2 * (pcin + pcout)            # double-buffered X / out
    scratch = 4 * rows * pcin                         # hop-state scratch
    resident = 4 * (2 * n_pad * n_pad                 # A_hat
                    + 2 * (gdep + 1) * pcin * pcout   # block-diag weights
                    + 2 * pcout)                      # bias
    temps = 4 * rows * (pcin + pcout)                 # matmul/VPU temporaries
    return blocks + scratch + resident + temps


def _choose_groups_per_block(gtot, n_pad, pcin, pcout, gdep, budget, min_steps,
                             max_groups=16):
    gt = 1
    for cand in range(1, min(gtot, max_groups) + 1):
        if _vmem_bytes_estimate(cand, n_pad, pcin, pcout, gdep) <= budget:
            gt = cand
    # keep >= min_steps grid steps when the problem allows it (megacore / v7x)
    gt = min(gt, max(1, gtot // min_steps))
    return max(gt, 1)


# ----------------------------------------------------------------------------
# Wrapper.
# ----------------------------------------------------------------------------
def mixprop_forward(x, adj, weight, bias, *, gdep, alpha,
                    precision=lax.Precision.HIGHEST, groups_per_block=None):
    c_in, n, seq_len = x.shape
    c_out = weight.shape[0]
    assert weight.shape == (c_out, (gdep + 1) * c_in)
    assert adj.shape == (n, n)

    cfg = _hw_config()
    f32 = jnp.float32

    # ---- node padding to the MXU-friendly multiple (identity pad rows) ----
    node_mult = 128 if n <= 128 else cfg["node_multiple"]
    n_pad = _round_up(n, node_mult)
    adj_p = jnp.zeros((n_pad, n_pad), f32).at[:n, :n].set(adj.astype(f32))

    # Tile-invariant adjacency normalization, hoisted out of the main grid.
    a_hat = pl.pallas_call(
        _normalize_adj_kernel,
        out_shape=jax.ShapeDtypeStruct((n_pad, n_pad), f32),
    )(adj_p)

    # ---- time packing: P steps per group so channels land on lanes ----
    p = _choose_time_pack(c_in, c_out, gdep)
    pcin, pcout = p * c_in, p * c_out
    gtot = _cdiv(seq_len, p)

    if groups_per_block is None:
        groups_per_block = _choose_groups_per_block(
            gtot, n_pad, pcin, pcout, gdep, cfg["vmem_budget"], cfg["min_steps"])
    gt = int(groups_per_block)
    gtot_pad = _round_up(gtot, gt)
    l_pad = gtot_pad * p

    # ---- pack X: (c_in, n, L) -> (gtot_pad*n_pad, P*c_in), lanes = (p, c) ----
    xp = jnp.zeros((c_in, n_pad, l_pad), f32).at[:, :n, :seq_len].set(
        x.astype(f32))
    xp = (xp.reshape(c_in, n_pad, gtot_pad, p)
            .transpose(2, 1, 3, 0)
            .reshape(gtot_pad * n_pad, pcin))

    # ---- block-diagonal projection weights B_k = kron(I_P, W_k^T) ----
    eye_p = jnp.eye(p, dtype=f32)
    b_all = jnp.stack(
        [jnp.kron(eye_p, weight[:, k * c_in:(k + 1) * c_in].astype(f32).T)
         for k in range(gdep + 1)], axis=0)              # (gdep+1, P*cin, P*cout)
    bias_p = jnp.tile(bias.astype(f32), p).reshape(1, pcout)

    rows_blk = gt * n_pad
    grid = (gtot_pad // gt,)
    kernel = functools.partial(
        _mixprop_kernel, gdep=gdep, alpha=float(alpha), n_pad=n_pad,
        groups_per_block=gt, precision=precision)

    outp = pl.pallas_call(
        kernel,
        out_shape=jax.ShapeDtypeStruct((gtot_pad * n_pad, pcout), f32),
        grid=grid,
        in_specs=[
            pl.BlockSpec((rows_blk, pcin), lambda i: (i, 0)),      # X rows
            pl.BlockSpec((n_pad, n_pad), lambda i: (0, 0)),        # A_hat
            pl.BlockSpec((gdep + 1, pcin, pcout), lambda i: (0, 0, 0)),  # B_k
            pl.BlockSpec((1, pcout), lambda i: (0, 0)),            # bias
        ],
        out_specs=pl.BlockSpec((rows_blk, pcout), lambda i: (i, 0)),
        scratch_shapes=[pltpu.VMEM((rows_blk, pcin), f32)],        # hop state
        compiler_params=pltpu.CompilerParams(
            dimension_semantics=("parallel",),
            vmem_limit_bytes=int(cfg["vmem_limit"]),
        ),
    )(xp, a_hat, b_all, bias_p)

    # ---- unpack: (gtot_pad*n_pad, P*c_out) -> (c_out, n, seq_len) ----
    out = (outp.reshape(gtot_pad, n_pad, p, c_out)
               .transpose(3, 1, 0, 2)
               .reshape(c_out, n_pad, l_pad))
    return out[:, :n, :seq_len].astype(x.dtype)


# ----------------------------------------------------------------------------
# Pure-JAX reference mirroring the PyTorch forward.
# ----------------------------------------------------------------------------
def mixprop_reference(x, adj, weight, bias, *, gdep, alpha):
    n = adj.shape[0]
    a = adj + jnp.eye(n, dtype=adj.dtype)
    a = a / jnp.sum(a, axis=1, keepdims=True)
    h = x
    h0 = x
    for _ in range(gdep):
        h = alpha * x + (1 - alpha) * jnp.einsum(
            "cwl,vw->cvl", h, a, precision=lax.Precision.HIGHEST)
        h0 = jnp.concatenate([h0, h], axis=0)   # hop-major, channel-minor
    out = jnp.einsum("oc,cvl->ovl", weight, h0, precision=lax.Precision.HIGHEST)
    return out + bias[:, None, None]


if __name__ == "__main__":
    # small, MixProp-consistent shapes (ragged seq_len exercises time padding,
    # n=16 exercises node padding to 128).
    c_in, c_out, gdep, alpha = 4, 8, 3, 0.1
    num_nodes, seq_len = 16, 250

    key = jax.random.PRNGKey(0)
    kx, ka, kw, kb = jax.random.split(key, 4)

    x = jax.random.normal(kx, (c_in, num_nodes, seq_len), dtype=jnp.float32)
    adj = jax.random.uniform(ka, (num_nodes, num_nodes), dtype=jnp.float32)

    # deterministic parameter init matching _reset_parameters():
    #   weight (dim>1): xavier_uniform_; bias (dim==1): uniform_ in [0, 1)
    fan_in = (gdep + 1) * c_in
    bound = (6.0 / (fan_in + c_out)) ** 0.5
    weight = jax.random.uniform(kw, (c_out, fan_in), jnp.float32, -bound, bound)
    bias = jax.random.uniform(kb, (c_out,), jnp.float32, 0.0, 1.0)

    out = mixprop_forward(x, adj, weight, bias, gdep=gdep, alpha=alpha)
    out = jax.block_until_ready(out)

    ref = mixprop_reference(x, adj, weight, bias, gdep=gdep, alpha=alpha)
    assert out.shape == (c_out, num_nodes, seq_len)
    assert bool(jnp.all(jnp.isfinite(out))), "non-finite values in output"
    assert jnp.allclose(out, ref, atol=1e-4, rtol=1e-4), "mismatch vs reference"

    print("KERNEL_OK")
</pallas_src>

<mosaic_0001>
module attributes {stable_mosaic.version = 11 : i64} {
  func.func @_normalize_adj_kernel(%arg0: memref<128x128xf32, #tpu.memory_space<vmem>>, %arg1: memref<128x128xf32, #tpu.memory_space<vmem>>) attributes {dimension_semantics = [], scalar_prefetch = 0 : i64, scratch_operands = 0 : i64, tpu.core_type = #tpu.core_type<tc>} {
    %c0 = arith.constant 0 : index
    %c0_0 = arith.constant 0 : index
    %0 = vector.load %arg0[%c0, %c0_0] : memref<128x128xf32, #tpu.memory_space<vmem>>, vector<128x128xf32>
    %1 = tpu.iota {dimensions = array<i32: 0>} : vector<128x128xi32>
    %2 = tpu.iota {dimensions = array<i32: 1>} : vector<128x128xi32>
    %3 = arith.cmpi eq, %1, %2 : vector<128x128xi32>
    %4 = arith.extui %3 : vector<128x128xi1> to vector<128x128xi32>
    %5 = arith.sitofp %4 : vector<128x128xi32> to vector<128x128xf32>
    %6 = arith.addf %0, %5 : vector<128x128xf32>
    %cst = arith.constant dense<0.000000e+00> : vector<128xf32>
    %7 = vector.multi_reduction <add>, %6, %cst [1] : vector<128x128xf32> to vector<128xf32>
    %8 = vector.shape_cast %7 : vector<128xf32> to vector<128x1xf32>
    %9 = vector.broadcast %8 : vector<128x1xf32> to vector<128x128xf32>
    %10 = arith.divf %6, %9 : vector<128x128xf32>
    %c0_1 = arith.constant 0 : index
    %c0_2 = arith.constant 0 : index
    %11 = vector.load %arg1[%c0_1, %c0_2] : memref<128x128xf32, #tpu.memory_space<vmem>>, vector<128x128xf32>
    tpu.vector_store %arg1[%c0_1, %c0_2], %10 {strides = array<i32>} : memref<128x128xf32, #tpu.memory_space<vmem>>, vector<128x128xf32>,
    return
  }
}

</mosaic_0001>

<llo_original>
// kernel: tpu_custom_call.1
$region0: #{tpu_custom_call.1}
  #allocation0 [shape = 'u32[]', space=smem, size = 0x4, offset = 0x4, fixed_abs, tag = 'smem constant byte address 0x4 - core index']
  #allocation1 [shape = 'u32[144,128]{1,0:T(1,128)}', space=vmem, size = 0x12000, scoped, tag = 'internal scratch']
  %s0 = inlined_call_operand.hbm [shape: f32[128,128], index: 0, kind: input, shape index: {}]
  %s1 = inlined_call_operand.hbm [shape: f32[128,128], index: 1, kind: output, shape index: {}]
  %s2 = sld [smem:[#allocation0]]
  $region18: #{tpu_custom_call.1} parent=0
    _
  %s4 = ssub.s32 1, %s2
  %s5 = scalar_select 0, %s4, %s2
  $region1: #{tpu_custom_call.1} parent=0
    #allocation2 [shape = 'u8[65536]{0}', space=vmem, size = 0x10000, scoped, tag = 'input window, operand 0, single buffered']
    #allocation3 [shape = 's32[1]{0}', space=sflag, size = 0x4, scoped, tag = 'scoped memory for tpu_custom_call.1']
    #allocation4 [shape = 's32[1]{0}', space=sflag, size = 0x4, scoped, tag = 'scoped memory for tpu_custom_call.1']
    #allocation5 [shape = 'u8[65536]{0}', space=vmem, size = 0x10000, scoped, tag = 'output window, operand 0, single buffered']
    %6 = vsyncpa [#allocation3], 0
    %7 = vsyncpa [#allocation4], 0
    // Predicated region
    $region2: #{tpu_custom_call.1} parent=1 // pred_check
      _
    $region3: #{tpu_custom_call.1} parent=1 // pred_check_branch
      %9 = sbr.rel (0) target = $region5
    $region4: #{tpu_custom_call.1} parent=1 // pred_region
      %s11 = ssub.s32 2048, 2048
      %12 = vsyncadd [#allocation3], %s11
      %s13 = sshll.u32 [#allocation2], 4
      %s14 = int_to_ptr.vmem [resolvable:$true] %s13
      %19 = dma.hbm_to_vmem [thread:$0]  %s0, 2048, %s14, [#allocation3], 128, 128, 8
    $region5: #{tpu_custom_call.1} parent=1 // pred_fallthru
      _
    // Predicated region
    $region6: #{tpu_custom_call.1} parent=1 // pred_check
      _
    $region7: #{tpu_custom_call.1} parent=1 // pred_check_branch
      %21 = sbr.rel (0) target = $region9
    $region8: #{tpu_custom_call.1} parent=1 // pred_region
      %22 = dma.done [#allocation3], 2048
    $region9: #{tpu_custom_call.1} parent=1 // pred_fallthru
      _
    %v23 = vld [vmem:[#allocation2] sm:$0xff]
    %v24 = vld [vmem:[#allocation2 + $0x8] sm:$0xff]
    %v25 = vld [vmem:[#allocation2 + $0x10] sm:$0xff]
    %v26 = vld [vmem:[#allocation2 + $0x18] sm:$0xff]
    %v27 = vld [vmem:[#allocation2 + $0x20] sm:$0xff]
    %v28 = vld [vmem:[#allocation2 + $0x28] sm:$0xff]
    %v29 = vld [vmem:[#allocation2 + $0x30] sm:$0xff]
    %v30 = vld [vmem:[#allocation2 + $0x38] sm:$0xff]
    %v31 = vld [vmem:[#allocation2 + $0x40] sm:$0xff]
    %v32 = vld [vmem:[#allocation2 + $0x48] sm:$0xff]
    %v33 = vld [vmem:[#allocation2 + $0x50] sm:$0xff]
    %v34 = vld [vmem:[#allocation2 + $0x58] sm:$0xff]
    %v35 = vld [vmem:[#allocation2 + $0x60] sm:$0xff]
    %v36 = vld [vmem:[#allocation2 + $0x68] sm:$0xff]
    %v37 = vld [vmem:[#allocation2 + $0x70] sm:$0xff]
    %v38 = vld [vmem:[#allocation2 + $0x78] sm:$0xff]
    %v39 = vlaneseq
    %v40 = vshrl.u32 %v39, 7
    %v41 = vadd.s32 %v40, 8
    %v42 = vadd.s32 %v40, 16
    %v43 = vadd.s32 %v40, 24
    %v44 = vadd.s32 %v40, 32
    %v45 = vadd.s32 %v40, 40
    %v46 = vadd.s32 %v40, 48
    %v47 = vadd.s32 %v40, 56
    %v48 = vadd.s32 %v40, 64
    %v49 = vadd.s32 %v40, 72
    %v50 = vadd.s32 %v40, 80
    %v51 = vadd.s32 %v40, 88
    %v52 = vadd.s32 %v40, 96
    %v53 = vadd.s32 %v40, 104
    %v54 = vadd.s32 %v40, 112
    %v55 = vadd.s32 %v40, 120
    %v56 = vlaneseq
    %v57 = vand.u32 %v56, 127
    %vm58 = vcmp.eq.s32.totalorder %v40, %v57
    %vm59 = vcmp.eq.s32.totalorder %v41, %v57
    %vm60 = vcmp.eq.s32.totalorder %v42, %v57
    %vm61 = vcmp.eq.s32.totalorder %v43, %v57
    %vm62 = vcmp.eq.s32.totalorder %v44, %v57
    %vm63 = vcmp.eq.s32.totalorder %v45, %v57
    %vm64 = vcmp.eq.s32.totalorder %v46, %v57
    %vm65 = vcmp.eq.s32.totalorder %v47, %v57
    %vm66 = vcmp.eq.s32.totalorder %v48, %v57
    %vm67 = vcmp.eq.s32.totalorder %v49, %v57
    %vm68 = vcmp.eq.s32.totalorder %v50, %v57
    %vm69 = vcmp.eq.s32.totalorder %v51, %v57
    %vm70 = vcmp.eq.s32.totalorder %v52, %v57
    %vm71 = vcmp.eq.s32.totalorder %v53, %v57
    %vm72 = vcmp.eq.s32.totalorder %v54, %v57
    %vm73 = vcmp.eq.s32.totalorder %v55, %v57
    %v74 = vsel %vm58, 1, 0
    %v75 = vsel %vm59, 1, 0
    %v76 = vsel %vm60, 1, 0
    %v77 = vsel %vm61, 1, 0
    %v78 = vsel %vm62, 1, 0
    %v79 = vsel %vm63, 1, 0
    %v80 = vsel %vm64, 1, 0
    %v81 = vsel %vm65, 1, 0
    %v82 = vsel %vm66, 1, 0
    %v83 = vsel %vm67, 1, 0
    %v84 = vsel %vm68, 1, 0
    %v85 = vsel %vm69, 1, 0
    %v86 = vsel %vm70, 1, 0
    %v87 = vsel %vm71, 1, 0
    %v88 = vsel %vm72, 1, 0
    %v89 = vsel %vm73, 1, 0
    %v90 = vcvt.s32.f32 %v74
    %v91 = vcvt.s32.f32 %v75
    %v92 = vcvt.s32.f32 %v76
    %v93 = vcvt.s32.f32 %v77
    %v94 = vcvt.s32.f32 %v78
    %v95 = vcvt.s32.f32 %v79
    %v96 = vcvt.s32.f32 %v80
    %v97 = vcvt.s32.f32 %v81
    %v98 = vcvt.s32.f32 %v82
    %v99 = vcvt.s32.f32 %v83
    %v100 = vcvt.s32.f32 %v84
    %v101 = vcvt.s32.f32 %v85
    %v102 = vcvt.s32.f32 %v86
    %v103 = vcvt.s32.f32 %v87
    %v104 = vcvt.s32.f32 %v88
    %v105 = vcvt.s32.f32 %v89
    %v106 = vadd.f32 %v23, %v90
    %v107 = vadd.f32 %v24, %v91
    %v108 = vadd.f32 %v25, %v92
    %v109 = vadd.f32 %v26, %v93
    %v110 = vadd.f32 %v27, %v94
    %v111 = vadd.f32 %v28, %v95
    %v112 = vadd.f32 %v29, %v96
    %v113 = vadd.f32 %v30, %v97
    %v114 = vadd.f32 %v31, %v98
    %v115 = vadd.f32 %v32, %v99
    %v116 = vadd.f32 %v33, %v100
    %v117 = vadd.f32 %v34, %v101
    %v118 = vadd.f32 %v35, %v102
    %v119 = vadd.f32 %v36, %v103
    %v120 = vadd.f32 %v37, %v104
    %v121 = vadd.f32 %v38, %v105
    %122 = vadd.xlane.f32.xlu0 %v106
    %v123 = vpop.xlane.xlu0 %122
    %124 = vadd.xlane.f32.xlu0 %v107
    %v125 = vpop.xlane.xlu0 %124
    %126 = vadd.xlane.f32.xlu0 %v108
    %v127 = vpop.xlane.xlu0 %126
    %128 = vadd.xlane.f32.xlu0 %v109
    %v129 = vpop.xlane.xlu0 %128
    %130 = vadd.xlane.f32.xlu0 %v110
    %v131 = vpop.xlane.xlu0 %130
    %132 = vadd.xlane.f32.xlu0 %v111
    %v133 = vpop.xlane.xlu0 %132
    %134 = vadd.xlane.f32.xlu0 %v112
    %v135 = vpop.xlane.xlu0 %134
    %136 = vadd.xlane.f32.xlu0 %v113
    %v137 = vpop.xlane.xlu0 %136
    %138 = vadd.xlane.f32.xlu0 %v114
    %v139 = vpop.xlane.xlu0 %138
    %140 = vadd.xlane.f32.xlu0 %v115
    %v141 = vpop.xlane.xlu0 %140
    %142 = vadd.xlane.f32.xlu0 %v116
    %v143 = vpop.xlane.xlu0 %142
    %144 = vadd.xlane.f32.xlu0 %v117
    %v145 = vpop.xlane.xlu0 %144
    %146 = vadd.xlane.f32.xlu0 %v118
    %v147 = vpop.xlane.xlu0 %146
    %148 = vadd.xlane.f32.xlu0 %v119
    %v149 = vpop.xlane.xlu0 %148
    %150 = vadd.xlane.f32.xlu0 %v120
    %v151 = vpop.xlane.xlu0 %150
    %152 = vadd.xlane.f32.xlu0 %v121
    %v153 = vpop.xlane.xlu0 %152
    %v154 = vrcp.pop %v123
    %v155 = vmul.f32 %v106, %v154
    %v156 = vrcp.pop %v125
    %v157 = vmul.f32 %v107, %v156
    %v158 = vrcp.pop %v127
    %v159 = vmul.f32 %v108, %v158
    %v160 = vrcp.pop %v129
    %v161 = vmul.f32 %v109, %v160
    %v162 = vrcp.pop %v131
    %v163 = vmul.f32 %v110, %v162
    %v164 = vrcp.pop %v133
    %v165 = vmul.f32 %v111, %v164
    %v166 = vrcp.pop %v135
    %v167 = vmul.f32 %v112, %v166
    %v168 = vrcp.pop %v137
    %v169 = vmul.f32 %v113, %v168
    %v170 = vrcp.pop %v139
    %v171 = vmul.f32 %v114, %v170
    %v172 = vrcp.pop %v141
    %v173 = vmul.f32 %v115, %v172
    %v174 = vrcp.pop %v143
    %v175 = vmul.f32 %v116, %v174
    %v176 = vrcp.pop %v145
    %v177 = vmul.f32 %v117, %v176
    %v178 = vrcp.pop %v147
    %v179 = vmul.f32 %v118, %v178
    %v180 = vrcp.pop %v149
    %v181 = vmul.f32 %v119, %v180
    %v182 = vrcp.pop %v151
    %v183 = vmul.f32 %v120, %v182
    %v184 = vrcp.pop %v153
    %v185 = vmul.f32 %v121, %v184
    %186 = vst [vmem:[#allocation5] sm:$0xff] %v155
    %187 = vst [vmem:[#allocation5 + $0x8] sm:$0xff] %v157
    %188 = vst [vmem:[#allocation5 + $0x10] sm:$0xff] %v159
    %189 = vst [vmem:[#allocation5 + $0x18] sm:$0xff] %v161
    %190 = vst [vmem:[#allocation5 + $0x20] sm:$0xff] %v163
    %191 = vst [vmem:[#allocation5 + $0x28] sm:$0xff] %v165
    %192 = vst [vmem:[#allocation5 + $0x30] sm:$0xff] %v167
    %193 = vst [vmem:[#allocation5 + $0x38] sm:$0xff] %v169
    %194 = vst [vmem:[#allocation5 + $0x40] sm:$0xff] %v171
    %195 = vst [vmem:[#allocation5 + $0x48] sm:$0xff] %v173
    %196 = vst [vmem:[#allocation5 + $0x50] sm:$0xff] %v175
    %197 = vst [vmem:[#allocation5 + $0x58] sm:$0xff] %v177
    %198 = vst [vmem:[#allocation5 + $0x60] sm:$0xff] %v179
    %199 = vst [vmem:[#allocation5 + $0x68] sm:$0xff] %v181
    %200 = vst [vmem:[#allocation5 + $0x70] sm:$0xff] %v183
    %201 = vst [vmem:[#allocation5 + $0x78] sm:$0xff] %v185
    // Predicated region
    $region10: #{tpu_custom_call.1} parent=1 // pred_check
      _
    $region11: #{tpu_custom_call.1} parent=1 // pred_check_branch
      %203 = sbr.rel (0) target = $region13
    $region12: #{tpu_custom_call.1} parent=1 // pred_region
      %s205 = ssub.s32 2048, 2048
      %206 = vsyncadd [#allocation4], %s205
      %s207 = sshll.u32 [#allocation5], 4
      %s208 = int_to_ptr.vmem [resolvable:$true] %s207
      %213 = dma.vmem_to_hbm [thread:$0]  %s208, 2048, %s1, [#allocation4], 128, 128, 8
    $region13: #{tpu_custom_call.1} parent=1 // pred_fallthru
      _
    // Predicated region
    $region14: #{tpu_custom_call.1} parent=1 // pred_check
      _
    $region15: #{tpu_custom_call.1} parent=1 // pred_check_branch
      %215 = sbr.rel (0) target = $region17
    $region16: #{tpu_custom_call.1} parent=1 // pred_region
      %216 = dma.done [#allocation4], 2048
    $region17: #{tpu_custom_call.1} parent=1 // pred_fallthru
      _
    %217 = vsyncpa [#allocation3], 1
    %218 = vsyncpa [#allocation4], 1

</llo_original>
